<compile_context>
chip_gen: v7x
topology: tpu7x:2x2x1
jax: 0.10.0
libtpu: 0.0.40
codegen_flags: <defaults>
</compile_context>

<pallas_src>
import functools

import jax
import jax.numpy as jnp
from jax import lax
from jax.experimental import pallas as pl
from jax.experimental.pallas import tpu as pltpu


def _round_up(x, m):
    return ((x + m - 1) // m) * m


def _ls_loss_kernel(out_ref, tgt_ref, loss_ref, cnt_ref, *,
                    padding_idx, label_smoothing, vocab_size, tile_rows,
                    tgt_resident):
    """One grid step: fused partial label-smoothing loss over one row tile.

    out_ref : (tile_rows, V) float log-prob block (the last block may contain
              out-of-bounds garbage rows; they are masked before reduction).
    tgt_ref : (Np, 1) int32 resident targets (tgt_resident=True) or a
              (tile_rows, 1) per-block slice (tgt_resident=False).  Padded rows
              hold `padding_idx`, so the non-pad mask excludes them.
    loss_ref, cnt_ref : (1, 1, 128) f32 per-program partial outputs.
    """
    i = pl.program_id(0)
    logp = out_ref[...].astype(jnp.float32)                        # (TR, V)

    if tgt_resident:
        row0 = pl.multiple_of(i * tile_rows, tile_rows)
        tgt = tgt_ref[pl.ds(row0, tile_rows), :]                   # (TR, 1)
    else:
        tgt = tgt_ref[...]                                         # (TR, 1)

    nonpad = tgt != padding_idx                                    # (TR, 1) bool

    eps_i = label_smoothing / vocab_size
    on_w = jnp.float32(1.0 - label_smoothing + eps_i)              # weight at target
    off_w = jnp.float32(eps_i)                                     # weight elsewhere

    col = lax.broadcasted_iota(jnp.int32, logp.shape, 1)           # (TR, V)
    weight = jnp.where(col == tgt, on_w, off_w)                    # (TR, V)
    # Select (not multiply) with the mask so garbage rows of the ragged last
    # block (possibly NaN/Inf) never reach the reduction.
    contrib = jnp.where(nonpad, weight * logp, jnp.float32(0.0))   # (TR, V)

    loss_partial = -jnp.sum(contrib)                               # scalar
    cnt_partial = jnp.sum(nonpad.astype(jnp.float32))              # scalar

    loss_ref[...] = jnp.broadcast_to(loss_partial, loss_ref.shape)
    cnt_ref[...] = jnp.broadcast_to(cnt_partial, cnt_ref.shape)


def label_smoothing_loss(output, target, *, label_smoothing, tgt_vocab_size,
                         ignore_index, tile_rows=None,
                         vmem_limit_bytes=32 * 1024 * 1024):
    """Pallas implementation of LabelSmoothingLoss.forward."""
    V = tgt_vocab_size
    out2 = output.reshape(-1, V)
    tgt1 = target.reshape(-1).astype(jnp.int32)
    N = out2.shape[0]
    itemsize = jnp.dtype(out2.dtype).itemsize

    if tile_rows is None:
        # ~6 MiB per log-prob block -> ~12 MiB double-buffered; fits every
        # generation under the 32 MiB scoped-VMEM limit set below.
        # Multiple of 16 keeps bf16 inputs sublane-packed.
        block_budget = 6 * 1024 * 1024
        rows = block_budget // max(1, V * itemsize)
        rows = (min(1024, rows) // 16) * 16
        rows = max(16, rows)
        rows = min(rows, _round_up(N, 16))
        tile_rows = max(16, rows)
    # TODO(synk): for very large vocabularies (V * itemsize >> a few MiB per
    # row), add a second grid axis tiling V so blocks stay large without
    # blowing VMEM (notably on v7x's 64 MiB).

    grid_rows = pl.cdiv(N, tile_rows)
    Np = grid_rows * tile_rows

    # Only the tiny target vector is padded (with ignore_index, so padded rows
    # are masked out).  The big (N, V) tensor is NOT padded/copied; the ragged
    # last block reads OOB garbage that the kernel masks before reducing.
    if Np != N:
        tgt1 = jnp.pad(tgt1, (0, Np - N), constant_values=ignore_index)
    tgt2 = tgt1.reshape(Np, 1)

    # Keep the targets resident in VMEM (one DMA total) when they are small;
    # otherwise fall back to a small per-block DMA.
    tgt_resident = (Np * 4) <= (2 * 1024 * 1024)
    if tgt_resident:
        tgt_spec = pl.BlockSpec((Np, 1), lambda i: (0, 0))
    else:
        tgt_spec = pl.BlockSpec((tile_rows, 1), lambda i: (i, 0))

    kernel = functools.partial(
        _ls_loss_kernel,
        padding_idx=ignore_index,
        label_smoothing=float(label_smoothing),
        vocab_size=float(V),
        tile_rows=tile_rows,
        tgt_resident=tgt_resident)

    part_shape = jax.ShapeDtypeStruct((grid_rows, 1, 128), jnp.float32)
    part_spec = pl.BlockSpec((1, 1, 128), lambda i: (i, 0, 0))

    loss_parts, cnt_parts = pl.pallas_call(
        kernel,
        out_shape=(part_shape, part_shape),
        grid_spec=pltpu.PrefetchScalarGridSpec(
            num_scalar_prefetch=0,
            grid=(grid_rows,),
            in_specs=[
                pl.BlockSpec((tile_rows, V), lambda i: (i, 0)),
                tgt_spec,
            ],
            out_specs=(part_spec, part_spec),
        ),
        compiler_params=pltpu.CompilerParams(
            dimension_semantics=("parallel",),
            vmem_limit_bytes=vmem_limit_bytes),
    )(out2, tgt2)

    loss_sum = jnp.sum(loss_parts[:, 0, 0])
    cnt = jnp.sum(cnt_parts[:, 0, 0])
    # Note: if every token equals ignore_index, cnt == 0 and this yields NaN,
    # matching the reference PyTorch module's behavior.
    return loss_sum / cnt


def _reference(output, target, *, label_smoothing, tgt_vocab_size, ignore_index):
    V = tgt_vocab_size
    out2 = output.reshape(-1, V).astype(jnp.float32)
    tgt1 = target.reshape(-1)
    mask = (tgt1 != ignore_index).astype(jnp.float32)
    gathered = jnp.take_along_axis(
        out2, tgt1[:, None].astype(jnp.int32), axis=-1)[:, 0]
    nll = -jnp.sum(gathered * mask)
    smooth = -jnp.sum(jnp.sum(out2, axis=-1) * mask)
    eps_i = label_smoothing / V
    return ((1.0 - label_smoothing) * nll + eps_i * smooth) / jnp.sum(mask)


if __name__ == "__main__":
    B, T, V = 2, 8, 32
    label_smoothing = 0.1
    ignore_index = 0

    key = jax.random.PRNGKey(0)
    k1, k2 = jax.random.split(key)
    # log-probabilities (as produced by log_softmax upstream)
    logits = jax.random.normal(k1, (B, T, V), dtype=jnp.float32)
    output = jax.nn.log_softmax(logits, axis=-1)
    target = jax.random.randint(k2, (B, T), 0, V, dtype=jnp.int32)

    loss = label_smoothing_loss(
        output, target,
        label_smoothing=label_smoothing,
        tgt_vocab_size=V,
        ignore_index=ignore_index,
    )
    loss = jax.block_until_ready(loss)

    ref = _reference(output, target,
                     label_smoothing=label_smoothing,
                     tgt_vocab_size=V,
                     ignore_index=ignore_index)
    assert jnp.allclose(loss, ref, rtol=1e-5, atol=1e-5), (loss, ref)
    print("KERNEL_OK")
</pallas_src>

<mosaic_0001>
module attributes {stable_mosaic.version = 11 : i64} {
  func.func @_ls_loss_kernel(%arg0: i32, %arg1: memref<16x32xf32, #tpu.memory_space<vmem>>, %arg2: memref<16x1xi32, #tpu.memory_space<vmem>>, %arg3: memref<1x1x128xf32, #tpu.memory_space<vmem>>, %arg4: memref<1x1x128xf32, #tpu.memory_space<vmem>>) attributes {dimension_semantics = [#tpu.dimension_semantics<parallel>], iteration_bounds = array<i64: 1>, scalar_prefetch = 0 : i64, scratch_operands = 0 : i64, tpu.core_type = #tpu.core_type<tc>, window_params = [{transform_indices = @transform_0, window_bounds = array<i64: 16, 32>}, {pipeline_mode = #tpu.pipeline_mode<synchronous>, transform_indices = @transform_1, window_bounds = array<i64: 16, 1>}, {transform_indices = @transform_2, window_bounds = array<i64: 1, 1, 128>}, {transform_indices = @transform_3, window_bounds = array<i64: 1, 1, 128>}]} {
    %c0 = arith.constant 0 : index
    %c0_0 = arith.constant 0 : index
    %0 = vector.load %arg1[%c0, %c0_0] : memref<16x32xf32, #tpu.memory_space<vmem>>, vector<16x32xf32>
    %c16_i32 = arith.constant 16 : i32
    %1 = arith.muli %arg0, %c16_i32 : i32
    %2 = tpu.assume_multiple %1, 16 : i32
    %3 = arith.index_cast %2 : i32 to index
    %c0_1 = arith.constant 0 : index
    %4 = vector.load %arg2[%3, %c0_1] : memref<16x1xi32, #tpu.memory_space<vmem>>, vector<16x1xi32>
    %c0_i32 = arith.constant 0 : i32
    %5 = vector.broadcast %c0_i32 : i32 to vector<16x1xi32>
    %6 = arith.cmpi ne, %4, %5 : vector<16x1xi32>
    %7 = tpu.iota {dimensions = array<i32: 1>} : vector<16x32xi32>
    %8 = vector.broadcast %4 : vector<16x1xi32> to vector<16x32xi32>
    %9 = arith.cmpi eq, %7, %8 : vector<16x32xi32>
    %cst = arith.constant 0.903124988 : f32
    %cst_2 = arith.constant 3.125000e-03 : f32
    %10 = vector.broadcast %cst : f32 to vector<16x32xf32>
    %11 = vector.broadcast %cst_2 : f32 to vector<16x32xf32>
    %12 = arith.select %9, %10, %11 : vector<16x32xi1>, vector<16x32xf32>
    %13 = arith.mulf %12, %0 : vector<16x32xf32>
    %cst_3 = arith.constant 0.000000e+00 : f32
    %14 = vector.shape_cast %6 : vector<16x1xi1> to vector<16x1xi1>
    %15 = vector.broadcast %14 : vector<16x1xi1> to vector<16x32xi1>
    %16 = vector.broadcast %cst_3 : f32 to vector<16x32xf32>
    %17 = arith.select %15, %13, %16 : vector<16x32xi1>, vector<16x32xf32>
    %18 = vector.shape_cast %17 : vector<16x32xf32> to vector<1x16x32xf32>
    %cst_4 = arith.constant dense<0.000000e+00> : vector<1xf32>
    %19 = vector.multi_reduction <add>, %18, %cst_4 [1, 2] : vector<1x16x32xf32> to vector<1xf32>
    %20 = vector.shape_cast %19 : vector<1xf32> to vector<1x1x1xf32>
    %21 = vector.extract %20[0, 0, 0] : f32 from vector<1x1x1xf32>
    %cst_5 = arith.constant 0.000000e+00 : f32
    %22 = arith.subf %cst_5, %21 : f32
    %23 = arith.extui %6 : vector<16x1xi1> to vector<16x1xi32>
    %24 = arith.sitofp %23 : vector<16x1xi32> to vector<16x1xf32>
    %25 = vector.shape_cast %24 : vector<16x1xf32> to vector<1x16x1xf32>
    %cst_6 = arith.constant dense<0.000000e+00> : vector<1xf32>
    %26 = vector.multi_reduction <add>, %25, %cst_6 [1, 2] : vector<1x16x1xf32> to vector<1xf32>
    %27 = vector.shape_cast %26 : vector<1xf32> to vector<1x1x1xf32>
    %28 = vector.extract %27[0, 0, 0] : f32 from vector<1x1x1xf32>
    %29 = vector.broadcast %22 : f32 to vector<1x1x128xf32>
    %c0_7 = arith.constant 0 : index
    %c0_8 = arith.constant 0 : index
    %c0_9 = arith.constant 0 : index
    %30 = vector.load %arg3[%c0_7, %c0_8, %c0_9] : memref<1x1x128xf32, #tpu.memory_space<vmem>>, vector<1x1x128xf32>
    tpu.vector_store %arg3[%c0_7, %c0_8, %c0_9], %29 {strides = array<i32>} : memref<1x1x128xf32, #tpu.memory_space<vmem>>, vector<1x1x128xf32>,
    %31 = vector.broadcast %28 : f32 to vector<1x1x128xf32>
    %c0_10 = arith.constant 0 : index
    %c0_11 = arith.constant 0 : index
    %c0_12 = arith.constant 0 : index
    %32 = vector.load %arg4[%c0_10, %c0_11, %c0_12] : memref<1x1x128xf32, #tpu.memory_space<vmem>>, vector<1x1x128xf32>
    tpu.vector_store %arg4[%c0_10, %c0_11, %c0_12], %31 {strides = array<i32>} : memref<1x1x128xf32, #tpu.memory_space<vmem>>, vector<1x1x128xf32>,
    return
  }
  func.func @transform_0(%arg0: i32) -> (i32, i32) {
    %c0_i32 = arith.constant 0 : i32
    %c0_i32_0 = arith.constant 0 : i32
    return %arg0, %c0_i32 : i32, i32
  }
  func.func @transform_1(%arg0: i32) -> (i32, i32) {
    %c0_i32 = arith.constant 0 : i32
    %c0_i32_0 = arith.constant 0 : i32
    %c0_i32_1 = arith.constant 0 : i32
    return %c0_i32, %c0_i32_0 : i32, i32
  }
  func.func @transform_2(%arg0: i32) -> (i32, i32, i32) {
    %c0_i32 = arith.constant 0 : i32
    %c0_i32_0 = arith.constant 0 : i32
    %c0_i32_1 = arith.constant 0 : i32
    return %arg0, %c0_i32, %c0_i32_0 : i32, i32, i32
  }
  func.func @transform_3(%arg0: i32) -> (i32, i32, i32) {
    %c0_i32 = arith.constant 0 : i32
    %c0_i32_0 = arith.constant 0 : i32
    %c0_i32_1 = arith.constant 0 : i32
    return %arg0, %c0_i32, %c0_i32_0 : i32, i32, i32
  }
}

</mosaic_0001>

<llo_original>
// kernel: tpu_custom_call.1
$region0: #{tpu_custom_call.1}
  #allocation0 [shape = 'u32[]', space=smem, size = 0x4, offset = 0x4, fixed_abs, tag = 'smem constant byte address 0x4 - core index']
  #allocation1 [shape = 'u32[144,128]{1,0:T(1,128)}', space=vmem, size = 0x12000, scoped, tag = 'internal scratch']
  %s0 = inlined_call_operand.vmem [shape: f32[16,32], index: 0, kind: input, shape index: {}]
  %s1 = inlined_call_operand.vmem [shape: s32[16,1], index: 1, kind: input, shape index: {}]
  %s2 = inlined_call_operand.hbm [shape: f32[1,1,128], index: 2, kind: output, shape index: {0}]
  %s3 = inlined_call_operand.hbm [shape: f32[1,1,128], index: 3, kind: output, shape index: {1}]
  %4 = xla_tuple %s2, %s3
  %s5 = sld [smem:[#allocation0]]
  $region26: #{tpu_custom_call.1} parent=0
    _
  %s7 = ssub.s32 1, %s5
  %s8 = scalar_select 0, %s7, %s5
  $region1: #{tpu_custom_call.1} parent=0
    #allocation2 [shape = 'u8[512]{0}', space=vmem, size = 0x400, scoped, tag = 'output window, operand 0, single buffered']
    #allocation3 [shape = 's32[1]{0}', space=sflag, size = 0x4, scoped, tag = 'scoped memory for tpu_custom_call.1']
    #allocation4 [shape = 'u8[512]{0}', space=vmem, size = 0x400, scoped, tag = 'output window, operand 1, single buffered']
    #allocation5 [shape = 's32[1]{0}', space=sflag, size = 0x4, scoped, tag = 'scoped memory for tpu_custom_call.1']
    %9 = vsyncpa [#allocation3], 0
    %10 = vsyncpa [#allocation5], 0
    // Predicated region
    $region2: #{tpu_custom_call.1} parent=1 // pred_check
      _
    $region3: #{tpu_custom_call.1} parent=1 // pred_check_branch
      %12 = sbr.rel (0) target = $region5
    $region4: #{tpu_custom_call.1} parent=1 // pred_region
      _
    $region5: #{tpu_custom_call.1} parent=1 // pred_fallthru
      _
    // Predicated region
    $region6: #{tpu_custom_call.1} parent=1 // pred_check
      _
    $region7: #{tpu_custom_call.1} parent=1 // pred_check_branch
      %14 = sbr.rel (0) target = $region9
    $region8: #{tpu_custom_call.1} parent=1 // pred_region
      _
    $region9: #{tpu_custom_call.1} parent=1 // pred_fallthru
      _
    %v15 = vld [vmem:[%s0] sm:$0xff]
    %v16 = vld [vmem:[%s0 + $0x8] sm:$0xff]
    %s17 = smul.u32 0, 16
    %s18 = scalar_lea.vmem %s1, %s17
    %v19 = vld [vmem:[%s18] sm:$0xff]
    %v20 = vld [vmem:[%s18 + $0x8] sm:$0xff]
    %vm21 = vcmp.ne.s32.totalorder %v19, 0
    %vm22 = vcmp.ne.s32.totalorder %v20, 0
    %v23 = vlaneseq
    %v24 = vand.u32 %v23, 127
    %25 = vset.pattern.permute.xlu0 0
    %26 = vperm.xlu0 %25, %v19
    %v27 = vpop.permute.xlu0 %26
    %28 = vset.pattern.permute.xlu0 0
    %29 = vperm.xlu0 %28, %v20
    %v30 = vpop.permute.xlu0 %29
    %vm31 = vcmp.eq.s32.totalorder %v24, %v27
    %vm32 = vcmp.eq.s32.totalorder %v24, %v30
    %v33 = vsel %vm31, 0.903125, 0.003125
    %v34 = vsel %vm32, 0.903125, 0.003125
    %v35 = vmul.f32 %v33, %v15
    %v36 = vmul.f32 %v34, %v16
    %v37 = vsel %vm21, 1, 0
    %v38 = vsel %vm22, 1, 0
    %39 = vset.pattern.permute.xlu0 0
    %40 = vperm.xlu0 %39, %v37
    %v41 = vpop.permute.xlu0 %40
    %42 = vset.pattern.permute.xlu0 0
    %43 = vperm.xlu0 %42, %v38
    %v44 = vpop.permute.xlu0 %43
    %vm45 = vcmp.eq.s32.totalorder %v41, 1
    %vm46 = vcmp.eq.s32.totalorder %v44, 1
    %v47 = vsel %vm45, %v35, 0.0
    %v48 = vsel %vm46, %v36, 0.0
    %vm49 = vcmask 261120
    %v50 = vsel %vm49, %v47, 0.0
    %v51 = vsel %vm49, %v48, 0.0
    %v52 = vadd.f32 %v50, %v51
    %53 = vadd.xlane.f32.xlu0 %v52
    %v54 = vpop.xlane.xlu0 %53
    %v55 = vrot.slane %v54, 4
    %v56 = vadd.f32 %v54, %v55
    %v57 = vrot.slane %v56, 2
    %v58 = vadd.f32 %v56, %v57
    %v59 = vrot.slane %v58, 1
    %v60 = vadd.f32 %v58, %v59
    %s61 = vtos %v60
    %s62 = ssub.f32 0.0, %s61
    %v63 = vcvt.s32.f32 %v37
    %v64 = vcvt.s32.f32 %v38
    %vm65 = vcmask 7168
    %v66 = vsel %vm65, %v63, 0.0
    %v67 = vsel %vm65, %v64, 0.0
    %v68 = vadd.f32 %v66, %v67
    %69 = vadd.xlane.f32.xlu0 %v68
    %v70 = vpop.xlane.xlu0 %69
    %v71 = vrot.slane %v70, 4
    %v72 = vadd.f32 %v70, %v71
    %v73 = vrot.slane %v72, 2
    %v74 = vadd.f32 %v72, %v73
    %v75 = vrot.slane %v74, 1
    %v76 = vadd.f32 %v74, %v75
    %s77 = vtos %v76
    %v78 = vstv %s62
    %79 = vst [vmem:[#allocation2] sm:$0x1] %v78
    %v80 = vstv %s77
    %81 = vst [vmem:[#allocation4] sm:$0x1] %v80
    // Predicated region
    $region10: #{tpu_custom_call.1} parent=1 // pred_check
      _
    $region11: #{tpu_custom_call.1} parent=1 // pred_check_branch
      %83 = sbr.rel (0) target = $region13
    $region12: #{tpu_custom_call.1} parent=1 // pred_region
      %s85 = ssub.s32 16, 16
      %86 = vsyncadd [#allocation3], %s85
      %s88 = sshll.u32 [#allocation2], 4
      %s89 = int_to_ptr.vmem [resolvable:$true] %s88
      %91 = dma.vmem_to_hbm [thread:$0]  %s89, 16, %s2, [#allocation3]
    $region13: #{tpu_custom_call.1} parent=1 // pred_fallthru
      _
    // Predicated region
    $region14: #{tpu_custom_call.1} parent=1 // pred_check
      _
    $region15: #{tpu_custom_call.1} parent=1 // pred_check_branch
      %93 = sbr.rel (0) target = $region17
    $region16: #{tpu_custom_call.1} parent=1 // pred_region
      %s95 = ssub.s32 16, 16
      %96 = vsyncadd [#allocation5], %s95
      %s98 = sshll.u32 [#allocation4], 4
      %s99 = int_to_ptr.vmem [resolvable:$true] %s98
      %101 = dma.vmem_to_hbm [thread:$0]  %s99, 16, %s3, [#allocation5]
    $region17: #{tpu_custom_call.1} parent=1 // pred_fallthru
      _
    // Predicated region
    $region18: #{tpu_custom_call.1} parent=1 // pred_check
      _
    $region19: #{tpu_custom_call.1} parent=1 // pred_check_branch
      %103 = sbr.rel (0) target = $region21
    $region20: #{tpu_custom_call.1} parent=1 // pred_region
      %104 = dma.done [#allocation3], 16
    $region21: #{tpu_custom_call.1} parent=1 // pred_fallthru
      _
    // Predicated region
    $region22: #{tpu_custom_call.1} parent=1 // pred_check
      _
    $region23: #{tpu_custom_call.1} parent=1 // pred_check_branch
      %106 = sbr.rel (0) target = $region25
    $region24: #{tpu_custom_call.1} parent=1 // pred_region
      %107 = dma.done [#allocation5], 16
    $region25: #{tpu_custom_call.1} parent=1 // pred_fallthru
      _
    %108 = vsyncpa [#allocation3], 1
    %109 = vsyncpa [#allocation5], 1

</llo_original>
